<compile_context>
chip_gen: v5e
topology: v5e:2x2
jax: 0.10.0
libtpu: 0.0.40
codegen_flags: <defaults>
</compile_context>

<pallas_src>
import math

import jax
import jax.numpy as jnp
from jax import lax
from jax.experimental import pallas as pl
from jax.experimental.pallas import tpu as pltpu


def _attention_head_kernel(x_ref, wqkv_ref, bqkv_ref, o_ref, q_sc, k_sc, v_sc):
    # x_ref:    (S, E)   bf16  -- full sequence for the current batch element
    # wqkv_ref: (E, 3H)  bf16  -- fused [Wq | Wk | Wv]
    # bqkv_ref: (1, 3H)  f32   -- fused [bq | bk | bv]
    # o_ref:    (TQ, H)        -- current query tile of the output
    # q_sc/k_sc/v_sc: (S, H) bf16 VMEM scratch, persistent across q-tiles.
    qi = pl.program_id(1)
    TQ, H = o_ref.shape

    @pl.when(qi == 0)
    def _project_qkv():
        # One fused projection matmul per batch element (bf16 in, f32 acc).
        qkv = jnp.dot(x_ref[...], wqkv_ref[...],
                      preferred_element_type=jnp.float32) + bqkv_ref[...]
        scale = 1.0 / math.sqrt(H)
        q_sc[...] = (qkv[:, :H] * scale).astype(jnp.bfloat16)   # pre-scaled q
        k_sc[...] = qkv[:, H:2 * H].astype(jnp.bfloat16)
        v_sc[...] = qkv[:, 2 * H:].astype(jnp.bfloat16)

    row0 = pl.multiple_of(qi * TQ, TQ)
    q = q_sc[pl.ds(row0, TQ), :]            # (TQ, H) bf16
    k = k_sc[...]                           # (S, H)  bf16
    v = v_sc[...]                           # (S, H)  bf16

    # scores = q @ k^T without materializing a transposed copy of k.
    scores = lax.dot_general(q, k, (((1,), (1,)), ((), ())),
                             preferred_element_type=jnp.float32)   # (TQ, S)

    # Numerically stable softmax, all in f32; reciprocal on the EUP.
    m = jnp.max(scores, axis=-1, keepdims=True)
    e = jnp.exp(scores - m)
    p = e * pl.reciprocal(jnp.sum(e, axis=-1, keepdims=True), approx=True)

    out = jnp.dot(p.astype(jnp.bfloat16), v,
                  preferred_element_type=jnp.float32)               # (TQ, H)
    o_ref[...] = out.astype(o_ref.dtype)


def _pick_query_tile(S):
    """Largest query tile <= 512 that divides S (falls back to full S)."""
    if S <= 512:
        return S
    for tq in (512, 256, 128, 64, 32, 16, 8):
        if S % tq == 0:
            return tq
    return S


def attention_head(hidden_state, wq, bq, wk, bk, wv, bv):
    """hidden_state: [B, S, E]; w*: [E, H]; b*: [1, H] -> [B, S, H]."""
    B, S, E = hidden_state.shape
    H = wq.shape[1]
    TQ = _pick_query_tile(S)
    n_q = S // TQ

    # Fuse the three projections; MXU operands in bf16, bias stays f32.
    w_qkv = jnp.concatenate([wq, wk, wv], axis=1).astype(jnp.bfloat16)  # (E, 3H)
    b_qkv = jnp.concatenate([bq, bk, bv], axis=1).astype(jnp.float32)   # (1, 3H)
    x = hidden_state.astype(jnp.bfloat16)

    return pl.pallas_call(
        _attention_head_kernel,
        out_shape=jax.ShapeDtypeStruct((B, S, H), hidden_state.dtype),
        grid_spec=pltpu.PrefetchScalarGridSpec(
            num_scalar_prefetch=0,
            grid=(B, n_q),
            in_specs=[
                # Full sequence per batch element; same block index across the
                # q axis -> DMA'd only when b changes (revolving buffer).
                pl.BlockSpec((None, S, E), lambda b, q: (b, 0, 0)),
                pl.BlockSpec((E, 3 * H), lambda b, q: (0, 0)),
                pl.BlockSpec((1, 3 * H), lambda b, q: (0, 0)),
            ],
            out_specs=pl.BlockSpec((None, TQ, H), lambda b, q: (b, q, 0)),
            scratch_shapes=[
                pltpu.VMEM((S, H), jnp.bfloat16),   # q (pre-scaled)
                pltpu.VMEM((S, H), jnp.bfloat16),   # k
                pltpu.VMEM((S, H), jnp.bfloat16),   # v
            ],
        ),
        compiler_params=pltpu.CompilerParams(
            # Batch axis shards across TensorCores; q-tile axis must stay
            # sequential per batch because K/V scratch is filled at q-tile 0.
            dimension_semantics=("parallel", "arbitrary")),
    )(x, w_qkv, b_qkv)


def _reference(hidden_state, wq, bq, wk, bk, wv, bv):
    q = hidden_state @ wq + bq
    k = hidden_state @ wk + bk
    v = hidden_state @ wv + bv
    scores = jnp.einsum("bqd,bkd->bqk", q, k) / math.sqrt(q.shape[-1])
    weights = jax.nn.softmax(scores, axis=-1)
    return jnp.einsum("bqk,bkd->bqd", weights, v)


if __name__ == "__main__":
    B, S, E, H = 2, 8, 32, 16  # batch, seq, embed_dim, head_dim

    key = jax.random.PRNGKey(0)
    kx, kq, kbq, kk, kbk, kv, kbv = jax.random.split(key, 7)

    # Deterministic synthetic parameters (torch.nn.Linear uniform-style init).
    bound = 1.0 / math.sqrt(E)
    x = jax.random.normal(kx, (B, S, E), dtype=jnp.float32)
    wq = jax.random.uniform(kq, (E, H), jnp.float32, -bound, bound)
    bq = jax.random.uniform(kbq, (1, H), jnp.float32, -bound, bound)
    wk = jax.random.uniform(kk, (E, H), jnp.float32, -bound, bound)
    bk = jax.random.uniform(kbk, (1, H), jnp.float32, -bound, bound)
    wv = jax.random.uniform(kv, (E, H), jnp.float32, -bound, bound)
    bv = jax.random.uniform(kbv, (1, H), jnp.float32, -bound, bound)

    out = attention_head(x, wq, bq, wk, bk, wv, bv)
    out = jax.block_until_ready(out)

    ref = _reference(x, wq, bq, wk, bk, wv, bv)
    assert out.shape == (B, S, H)
    # bf16 MXU inputs + approx reciprocal -> loosen tolerance vs f32 reference.
    assert jnp.allclose(out, ref, atol=5e-2, rtol=5e-2), (
        "mismatch vs reference, max abs diff = "
        f"{float(jnp.max(jnp.abs(out - ref)))}")

    print("KERNEL_OK")
</pallas_src>

<mosaic_0001>
module attributes {stable_mosaic.version = 11 : i64} {
  func.func @_attention_head_kernel(%arg0: i32, %arg1: i32, %arg2: memref<1x8x32xbf16, #tpu.memory_space<vmem>>, %arg3: memref<32x48xbf16, #tpu.memory_space<vmem>>, %arg4: memref<1x48xf32, #tpu.memory_space<vmem>>, %arg5: memref<1x8x16xf32, #tpu.memory_space<vmem>>, %arg6: memref<8x16xbf16, #tpu.memory_space<vmem>>, %arg7: memref<8x16xbf16, #tpu.memory_space<vmem>>, %arg8: memref<8x16xbf16, #tpu.memory_space<vmem>>) attributes {dimension_semantics = [#tpu.dimension_semantics<parallel>, #tpu.dimension_semantics<arbitrary>], iteration_bounds = array<i64: 2, 1>, scalar_prefetch = 0 : i64, scratch_operands = 3 : i64, tpu.core_type = #tpu.core_type<tc>, window_params = [{transform_indices = @transform_0, window_bounds = array<i64: 1, 8, 32>}, {pipeline_mode = #tpu.pipeline_mode<synchronous>, transform_indices = @transform_1, window_bounds = array<i64: 32, 48>}, {pipeline_mode = #tpu.pipeline_mode<synchronous>, transform_indices = @transform_2, window_bounds = array<i64: 1, 48>}, {transform_indices = @transform_3, window_bounds = array<i64: 1, 8, 16>}]} {
    %c0_i32 = arith.constant 0 : i32
    %0 = arith.cmpi eq, %arg1, %c0_i32 : i32
    %1 = arith.extui %0 : i1 to i32
    %c0_i32_0 = arith.constant 0 : i32
    %2 = arith.cmpi ne, %1, %c0_i32_0 : i32
    scf.if %2 {
      %c0_11 = arith.constant 0 : index
      %c0_12 = arith.constant 0 : index
      %c0_13 = arith.constant 0 : index
      %25 = vector.load %arg2[%c0_11, %c0_12, %c0_13] : memref<1x8x32xbf16, #tpu.memory_space<vmem>>, vector<1x8x32xbf16>
      %26 = vector.shape_cast %25 : vector<1x8x32xbf16> to vector<8x32xbf16>
      %c0_14 = arith.constant 0 : index
      %c0_15 = arith.constant 0 : index
      %27 = vector.load %arg3[%c0_14, %c0_15] : memref<32x48xbf16, #tpu.memory_space<vmem>>, vector<32x48xbf16>
      %cst_16 = arith.constant dense<0.000000e+00> : vector<8x48xf32>
      %28 = tpu.matmul %26, %27, %cst_16 {dimension_numbers = #tpu.dot_dimension_numbers<[1], [0], [0], [1], [0, 0, 1, 1], [], []>} : vector<8x32xbf16>, vector<32x48xbf16>, vector<8x48xf32> -> vector<8x48xf32>
      %c0_17 = arith.constant 0 : index
      %c0_18 = arith.constant 0 : index
      %29 = vector.load %arg4[%c0_17, %c0_18] : memref<1x48xf32, #tpu.memory_space<vmem>>, vector<1x48xf32>
      %30 = vector.broadcast %29 : vector<1x48xf32> to vector<8x48xf32>
      %31 = arith.addf %28, %30 : vector<8x48xf32>
      %32 = vector.extract_strided_slice %31 {offsets = [0, 0], sizes = [8, 16], strides = [1, 1]} : vector<8x48xf32> to vector<8x16xf32>
      %cst_19 = arith.constant 2.500000e-01 : f32
      %33 = vector.broadcast %cst_19 : f32 to vector<8x16xf32>
      %34 = arith.mulf %32, %33 : vector<8x16xf32>
      %35 = arith.truncf %34 : vector<8x16xf32> to vector<8x16xbf16>
      %c0_20 = arith.constant 0 : index
      %c0_21 = arith.constant 0 : index
      %36 = vector.load %arg6[%c0_20, %c0_21] : memref<8x16xbf16, #tpu.memory_space<vmem>>, vector<8x16xbf16>
      tpu.vector_store %arg6[%c0_20, %c0_21], %35 {strides = array<i32>} : memref<8x16xbf16, #tpu.memory_space<vmem>>, vector<8x16xbf16>,
      %37 = vector.extract_strided_slice %31 {offsets = [0, 16], sizes = [8, 16], strides = [1, 1]} : vector<8x48xf32> to vector<8x16xf32>
      %38 = arith.truncf %37 : vector<8x16xf32> to vector<8x16xbf16>
      %c0_22 = arith.constant 0 : index
      %c0_23 = arith.constant 0 : index
      %39 = vector.load %arg7[%c0_22, %c0_23] : memref<8x16xbf16, #tpu.memory_space<vmem>>, vector<8x16xbf16>
      tpu.vector_store %arg7[%c0_22, %c0_23], %38 {strides = array<i32>} : memref<8x16xbf16, #tpu.memory_space<vmem>>, vector<8x16xbf16>,
      %40 = vector.extract_strided_slice %31 {offsets = [0, 32], sizes = [8, 16], strides = [1, 1]} : vector<8x48xf32> to vector<8x16xf32>
      %41 = arith.truncf %40 : vector<8x16xf32> to vector<8x16xbf16>
      %c0_24 = arith.constant 0 : index
      %c0_25 = arith.constant 0 : index
      %42 = vector.load %arg8[%c0_24, %c0_25] : memref<8x16xbf16, #tpu.memory_space<vmem>>, vector<8x16xbf16>
      tpu.vector_store %arg8[%c0_24, %c0_25], %41 {strides = array<i32>} : memref<8x16xbf16, #tpu.memory_space<vmem>>, vector<8x16xbf16>,
    } else {
    }
    %c8_i32 = arith.constant 8 : i32
    %3 = arith.muli %arg1, %c8_i32 : i32
    %4 = tpu.assume_multiple %3, 8 : i32
    %5 = arith.index_cast %4 : i32 to index
    %c0 = arith.constant 0 : index
    %6 = vector.load %arg6[%5, %c0] : memref<8x16xbf16, #tpu.memory_space<vmem>>, vector<8x16xbf16>
    %c0_1 = arith.constant 0 : index
    %c0_2 = arith.constant 0 : index
    %7 = vector.load %arg7[%c0_1, %c0_2] : memref<8x16xbf16, #tpu.memory_space<vmem>>, vector<8x16xbf16>
    %c0_3 = arith.constant 0 : index
    %c0_4 = arith.constant 0 : index
    %8 = vector.load %arg8[%c0_3, %c0_4] : memref<8x16xbf16, #tpu.memory_space<vmem>>, vector<8x16xbf16>
    %cst = arith.constant dense<0.000000e+00> : vector<8x8xf32>
    %9 = tpu.matmul %6, %7, %cst {dimension_numbers = #tpu.dot_dimension_numbers<[1], [1], [0], [0], [0, 0, 1, 0], [], []>} : vector<8x16xbf16>, vector<8x16xbf16>, vector<8x8xf32> -> vector<8x8xf32>
    %cst_5 = arith.constant dense<0xFF800000> : vector<8xf32>
    %10 = vector.multi_reduction <maximumf>, %9, %cst_5 [1] : vector<8x8xf32> to vector<8xf32>
    %11 = vector.shape_cast %10 : vector<8xf32> to vector<8x1xf32>
    %12 = vector.broadcast %11 : vector<8x1xf32> to vector<8x8xf32>
    %13 = arith.subf %9, %12 : vector<8x8xf32>
    %14 = math.exp %13 : vector<8x8xf32>
    %cst_6 = arith.constant dense<0.000000e+00> : vector<8xf32>
    %15 = vector.multi_reduction <add>, %14, %cst_6 [1] : vector<8x8xf32> to vector<8xf32>
    %16 = vector.shape_cast %15 : vector<8xf32> to vector<8x1xf32>
    %17 = tpu.reciprocal %16 {approx = true} : vector<8x1xf32> -> vector<8x1xf32>
    %18 = vector.broadcast %17 : vector<8x1xf32> to vector<8x8xf32>
    %19 = arith.mulf %14, %18 : vector<8x8xf32>
    %20 = arith.truncf %19 : vector<8x8xf32> to vector<8x8xbf16>
    %cst_7 = arith.constant dense<0.000000e+00> : vector<8x16xf32>
    %21 = tpu.matmul %20, %8, %cst_7 {dimension_numbers = #tpu.dot_dimension_numbers<[1], [0], [0], [1], [0, 0, 1, 1], [], []>} : vector<8x8xbf16>, vector<8x16xbf16>, vector<8x16xf32> -> vector<8x16xf32>
    %c0_8 = arith.constant 0 : index
    %c0_9 = arith.constant 0 : index
    %c0_10 = arith.constant 0 : index
    %22 = vector.load %arg5[%c0_8, %c0_9, %c0_10] : memref<1x8x16xf32, #tpu.memory_space<vmem>>, vector<1x8x16xf32>
    %23 = vector.shape_cast %22 : vector<1x8x16xf32> to vector<8x16xf32>
    %24 = vector.shape_cast %21 : vector<8x16xf32> to vector<1x8x16xf32>
    tpu.vector_store %arg5[%c0_8, %c0_9, %c0_10], %24 {strides = array<i32>} : memref<1x8x16xf32, #tpu.memory_space<vmem>>, vector<1x8x16xf32>,
    return
  }
  func.func @transform_0(%arg0: i32, %arg1: i32) -> (i32, i32, i32) {
    %c0_i32 = arith.constant 0 : i32
    %c0_i32_0 = arith.constant 0 : i32
    %c0_i32_1 = arith.constant 0 : i32
    return %arg0, %c0_i32, %c0_i32_0 : i32, i32, i32
  }
  func.func @transform_1(%arg0: i32, %arg1: i32) -> (i32, i32) {
    %c0_i32 = arith.constant 0 : i32
    %c0_i32_0 = arith.constant 0 : i32
    %c0_i32_1 = arith.constant 0 : i32
    return %c0_i32, %c0_i32_0 : i32, i32
  }
  func.func @transform_2(%arg0: i32, %arg1: i32) -> (i32, i32) {
    %c0_i32 = arith.constant 0 : i32
    %c0_i32_0 = arith.constant 0 : i32
    %c0_i32_1 = arith.constant 0 : i32
    return %c0_i32, %c0_i32_0 : i32, i32
  }
  func.func @transform_3(%arg0: i32, %arg1: i32) -> (i32, i32, i32) {
    %c0_i32 = arith.constant 0 : i32
    %c0_i32_0 = arith.constant 0 : i32
    return %arg0, %arg1, %c0_i32 : i32, i32, i32
  }
}

</mosaic_0001>

<llo_original>
// kernel: tpu_custom_call.1
$region0: #{tpu_custom_call.1}
  #allocation0 [shape = 'u32[]', space=smem, size = 0x4, offset = 0x4, fixed_abs, tag = 'smem constant byte address 0x4 - core index']
  #allocation1 [shape = 'u32[72,128]{1,0:T(1,128)}', space=vmem, size = 0x9000, scoped, tag = 'internal scratch']
  #allocation2 [shape = 'bf16[8,16]{1,0:T(8,128)(2,1)}', space=vmem, size = 0x800, scoped, tag = 'scratch operand']
  #allocation3 [shape = 'bf16[8,16]{1,0:T(8,128)(2,1)}', space=vmem, size = 0x800, scoped, tag = 'scratch operand']
  #allocation4 [shape = 'bf16[8,16]{1,0:T(8,128)(2,1)}', space=vmem, size = 0x800, scoped, tag = 'scratch operand']
  %s0 = inlined_call_operand.hbm [shape: bf16[2,8,32], index: 0, kind: input, shape index: {}]
  %s1 = inlined_call_operand.hbm [shape: bf16[32,48], index: 1, kind: input, shape index: {}]
  %s2 = inlined_call_operand.vmem [shape: f32[1,48], index: 2, kind: input, shape index: {}]
  %s3 = inlined_call_operand.hbm [shape: f32[2,8,16], index: 3, kind: output, shape index: {}]
  %s4 = sld [smem:[#allocation0]]
  $region57: #{tpu_custom_call.1} parent=0
    _
  %s6 = ssub.s32 1, %s4
  %s7 = scalar_select 0, %s6, %s4
  $region1: #{tpu_custom_call.1} parent=0
    #allocation5 [shape = 'u8[4096]{0}', space=vmem, size = 0x1000, scoped, tag = 'input window, operand 0']
    #allocation6 [shape = 's32[2]{0}', space=sflag, size = 0x8, scoped, tag = 'scoped memory for tpu_custom_call.1']
    #allocation7 [shape = 's32[2]{0}', space=sflag, size = 0x8, scoped, tag = 'scoped memory for tpu_custom_call.1']
    #allocation8 [shape = 'u8[8192]{0}', space=vmem, size = 0x2000, scoped, tag = 'input window, operand 1, single buffered']
    #allocation9 [shape = 's32[1]{0}', space=sflag, size = 0x4, scoped, tag = 'scoped memory for tpu_custom_call.1']
    #allocation10 [shape = 'u8[8192]{0}', space=vmem, size = 0x2000, scoped, tag = 'output window, operand 0']
    %8 = vsyncpa [#allocation6], 0
    %s9 = scalar_lea.sflag [#allocation6], 1
    %10 = vsyncpa %s9, 0
    %11 = vsyncpa [#allocation9], 0
    %12 = vsyncpa [#allocation7], 0
    %s13 = scalar_lea.sflag [#allocation7], 1
    %14 = vsyncpa %s13, 0
    loop: start=0, step=1, limit=4
    $region2: #{tpu_custom_call.1} parent=1 // loop_pre_header
      _
    $region3: #{tpu_custom_call.1} parent=1 // loop_header
      %s16 = sphi 0, %s20
      %p17 = scmp.ge.s32.totalorder %s16, 4
      %s23 = sphi 0, %s35
      %s24 = sphi 0, %s31
      %s25 = sphi 0, %s23
      %s26 = sphi 0, %s24
      %s27 = sphi 0, %s25
      %s28 = sphi 0, %s26
      %s38 = sphi 0, %s40
      %s41 = sphi 0, %s38
      %s42 = sphi 0, %s41
      %s58 = sphi 0, %s42
      %s62 = sphi 0, %s62
      %s64 = sphi 0, %s62
      %s65 = sphi 0, %s64
      %s79 = sphi 0, %s65
      %s83 = sphi 0, %s83
      %s85 = sphi 0, %s83
      %s86 = sphi 0, %s85
      %s100 = sphi 0, %s86
      %s108 = sphi 0, %s110
      %s111 = sphi 0, %s108
      %s112 = sphi 0, %s111
      %s128 = sphi 0, %s112
    $region4: #{tpu_custom_call.1} parent=1 // loop_header_branch
      %19 = sbr.rel (%p17) target = $region8
    $region5: #{tpu_custom_call.1} parent=1 // loop_body
      %s21 = ssub.s32 %s16, 1
      %s22 = ssub.s32 %s16, 2
      %s29 = sadd.s32 1, %s24
      %p30 = scmp.ge.s32.totalorder %s29, 1
      %s31 = scalar_select %p30, 0, %s29
      %s32 = sadd.s32 1, %s23
      %s33 = scalar_select %p30, %s32, %s23
      %p34 = scmp.ge.s32.totalorder %s33, 2
      %s35 = scalar_select %p34, 0, %s33
      %s36 = ssub.s32 %s23, %s35
      %p37 = scmp.eq.s32.totalorder %s36, 0
      %s39 = sadd.s32 %s38, 1
      %s40 = scalar_select %p37, %s38, %s39
      %p43 = pneg %p37
      %p44 = scmp.eq.s32.totalorder %s16, 1
      %p45 = por %p43, %p44
      %p46 = scmp.ne.s32.totalorder %s38, %s41
      %p47 = scmp.eq.s32.totalorder %s16, 0
      %p48 = por %p46, %p47
      %p49 = scmp.ne.s32.totalorder %s38, %s41
      %p50 = scmp.eq.s32.totalorder %s21, 1
      %p51 = por %p49, %p50
      %p52 = scmp.ne.s32.totalorder %s41, %s42
      %p53 = scmp.eq.s32.totalorder %s21, 0
      %p54 = por %p52, %p53
      %p55 = scmp.ne.s32.totalorder %s41, %s42
      %p56 = scmp.eq.s32.totalorder %s22, 1
      %p57 = por %p55, %p56
      %p59 = scmp.ne.s32.totalorder %s42, %s58
      %p60 = scmp.eq.s32.totalorder %s22, 0
      %p61 = por %p59, %p60
      %s63 = sadd.s32 %s62, 1
      %p66 = scmp.eq.s32.totalorder %s16, 1
      %p67 = scmp.ne.s32.totalorder %s62, %s64
      %p68 = scmp.eq.s32.totalorder %s16, 0
      %p69 = por %p67, %p68
      %p70 = scmp.ne.s32.totalorder %s62, %s64
      %p71 = scmp.eq.s32.totalorder %s21, 1
      %p72 = por %p70, %p71
      %p73 = scmp.ne.s32.totalorder %s64, %s65
      %p74 = scmp.eq.s32.totalorder %s21, 0
      %p75 = por %p73, %p74
      %p76 = scmp.ne.s32.totalorder %s64, %s65
      %p77 = scmp.eq.s32.totalorder %s22, 1
      %p78 = por %p76, %p77
      %p80 = scmp.ne.s32.totalorder %s65, %s79
      %p81 = scmp.eq.s32.totalorder %s22, 0
      %p82 = por %p80, %p81
      %s84 = sadd.s32 %s83, 1
      %p87 = scmp.eq.s32.totalorder %s16, 1
      %p88 = scmp.ne.s32.totalorder %s83, %s85
      %p89 = scmp.eq.s32.totalorder %s16, 0
      %p90 = por %p88, %p89
      %p91 = scmp.ne.s32.totalorder %s83, %s85
      %p92 = scmp.eq.s32.totalorder %s21, 1
      %p93 = por %p91, %p92
      %p94 = scmp.ne.s32.totalorder %s85, %s86
      %p95 = scmp.eq.s32.totalorder %s21, 0
      %p96 = por %p94, %p95
      %p97 = scmp.ne.s32.totalorder %s85, %s86
      %p98 = scmp.eq.s32.totalorder %s22, 1
      %p99 = por %p97, %p98
      %p101 = scmp.ne.s32.totalorder %s86, %s100
      %p102 = scmp.eq.s32.totalorder %s22, 0
      %p103 = por %p101, %p102
      %s104 = ssub.s32 %s23, %s35
      %s105 = ssub.s32 %s24, %s31
      %s106 = sor.u32 %s104, %s105
      %p107 = scmp.eq.s32.totalorder %s106, 0
      %s109 = sadd.s32 %s108, 1
      %s110 = scalar_select %p107, %s108, %s109
      %p113 = pneg %p107
      %p114 = scmp.eq.s32.totalorder %s16, 1
      %p115 = por %p113, %p114
      %p116 = scmp.ne.s32.totalorder %s108, %s111
      %p117 = scmp.eq.s32.totalorder %s16, 0
      %p118 = por %p116, %p117
      %p119 = scmp.ne.s32.totalorder %s108, %s111
      %p120 = scmp.eq.s32.totalorder %s21, 1
      %p121 = por %p119, %p120
      %p122 = scmp.ne.s32.totalorder %s111, %s112
      %p123 = scmp.eq.s32.totalorder %s21, 0
      %p124 = por %p122, %p123
      %p125 = scmp.ne.s32.totalorder %s111, %s112
      %p126 = scmp.eq.s32.totalorder %s22, 1
      %p127 = por %p125, %p126
      %p129 = scmp.ne.s32.totalorder %s112, %s128
      %p130 = scmp.eq.s32.totalorder %s22, 0
      %p131 = por %p129, %p130
      %p132 = scmp.le.s32.totalorder 1, %s16
      %p133 = scmp.lt.s32.totalorder %s16, 3
      %p134 = pnand %p132, %p133
      %p135 = pneg %p134
      // Predicated region
      $region9: #{tpu_custom_call.1} parent=5 // pred_check
        _
      $region10: #{tpu_custom_call.1} parent=5 // pred_check_branch
        %137 = sbr.rel (%p134) target = $region12
      $region11: #{tpu_custom_call.1} parent=5 // pred_region
        %s138 = ssub.s32 %s16, 1
        // Predicated region
        $region13: #{tpu_custom_call.1} parent=11 // pred_check
          %p139 = pneg %p75
        $region14: #{tpu_custom_call.1} parent=11 // pred_check_branch
          %141 = sbr.rel (%p139) target = $region16
        $region15: #{tpu_custom_call.1} parent=11 // pred_region
          %143 = vsyncadd [#allocation9], 0
          %s144 = sshll.u32 %s1, 4
          %s145 = int_to_ptr.hbm [resolvable:$true] %s144
          %s146 = sshll.u32 [#allocation8], 4
          %s147 = int_to_ptr.vmem [resolvable:$true] %s146
          %152 = dma.hbm_to_vmem [thread:$0]  %s145, 256, %s147, [#allocation9], 64, 64, 4
        $region16: #{tpu_custom_call.1} parent=11 // pred_fallthru
          _
        // Predicated region
        $region17: #{tpu_custom_call.1} parent=11 // pred_check
          %p153 = pneg %p96
        $region18: #{tpu_custom_call.1} parent=11 // pred_check_branch
          %155 = sbr.rel (%p153) target = $region20
        $region19: #{tpu_custom_call.1} parent=11 // pred_region
          _
        $region20: #{tpu_custom_call.1} parent=11 // pred_fallthru
          _
      $region12: #{tpu_custom_call.1} parent=5 // pred_fallthru
        _
      %p156 = scmp.lt.s32.totalorder %s16, 2
      // Predicated region
      $region21: #{tpu_custom_call.1} parent=5 // pred_check
        %p157 = pneg %p156
      $region22: #{tpu_custom_call.1} parent=5 // pred_check_branch
        %159 = sbr.rel (%p157) target = $region24
      $region23: #{tpu_custom_call.1} parent=5 // pred_region
        // Predicated region
        $region25: #{tpu_custom_call.1} parent=23 // pred_check
          %p160 = pneg %p48
        $region26: #{tpu_custom_call.1} parent=23 // pred_check_branch
          %162 = sbr.rel (%p160) target = $region28
        $region27: #{tpu_custom_call.1} parent=23 // pred_region
          %s163 = sand.u32 %s38, 1
          %s164 = scalar_lea.sflag [#allocation6], %s163
          %s165 = sand.u32 %s38, 1
          %s166 = smul.addr %s165, 4
          %s167 = scalar_lea.vmem [#allocation5], %s166
          %169 = vsyncadd %s164, 0
          %s170 = smul.addr %s23, 4
          %s171 = scalar_lea.hbm %s0, %s170
          %s173 = sshll.u32 %s171, 4
          %s174 = int_to_ptr.hbm [resolvable:$true] %s173
          %s175 = sshll.u32 %s167, 4
          %s176 = int_to_ptr.vmem [resolvable:$true] %s175
          %178 = dma.hbm_to_vmem [thread:$0]  %s174, 64, %s176, %s164
        $region28: #{tpu_custom_call.1} parent=23 // pred_fallthru
          _
      $region24: #{tpu_custom_call.1} parent=5 // pred_fallthru
        _
      %p179 = scmp.le.s32.totalorder 1, %s16
      %p180 = scmp.lt.s32.totalorder %s16, 3
      %p181 = pnand %p179, %p180
      %p182 = pneg %p181
      // Predicated region
      $region29: #{tpu_custom_call.1} parent=5 // pred_check
        _
      $region30: #{tpu_custom_call.1} parent=5 // pred_check_branch
        %184 = sbr.rel (%p181) target = $region32
      $region31: #{tpu_custom_call.1} parent=5 // pred_region
        %s185 = ssub.s32 %s16, 1
        %s186 = sand.u32 %s41, 1
        %s187 = scalar_lea.sflag [#allocation6], %s186
        %s188 = sand.u32 %s41, 1
        %s189 = smul.addr %s188, 4
        %s190 = scalar_lea.vmem [#allocation5], %s189
        // Predicated region
        $region33: #{tpu_custom_call.1} parent=31 // pred_check
          %p191 = pneg %p54
        $region34: #{tpu_custom_call.1} parent=31 // pred_check_branch
          %193 = sbr.rel (%p191) target = $region36
        $region35: #{tpu_custom_call.1} parent=31 // pred_region
          %195 = dma.done %s187, 64
        $region36: #{tpu_custom_call.1} parent=31 // pred_fallthru
          _
        // Predicated region
        $region37: #{tpu_custom_call.1} parent=31 // pred_check
          %p196 = pneg %p75
        $region38: #{tpu_custom_call.1} parent=31 // pred_check_branch
          %198 = sbr.rel (%p196) target = $region40
        $region39: #{tpu_custom_call.1} parent=31 // pred_region
          %200 = dma.done [#allocation9], 256
        $region40: #{tpu_custom_call.1} parent=31 // pred_fallthru
          _
        %s201 = sand.u32 %s41, 1
        %s202 = scalar_lea.sflag [#allocation6], %s201
        %s203 = sand.u32 %s41, 1
        %s204 = smul.addr %s203, 4
        %s205 = scalar_lea.vmem [#allocation5], %s204
        %p206 = pneg %p54
        %p207 = pneg %p51
        %p208 = pneg %p75
        %p209 = pneg %p72
        %p210 = pneg %p96
        %p211 = pneg %p93
        %p212 = pneg %p124
        %p213 = pneg %p121
        %s214 = sand.u32 %s111, 1
        %s215 = scalar_lea.sflag [#allocation7], %s214
        %s216 = sand.u32 %s111, 1
        %s217 = smul.addr %s216, 8
        %s218 = scalar_lea.vmem [#allocation10], %s217
        %p220 = scmp.eq.s32.totalorder %s26, 0
        // Predicated region
        $region41: #{tpu_custom_call.1} parent=31 // pred_check
          %p221 = pneg %p220
        $region42: #{tpu_custom_call.1} parent=31 // pred_check_branch
          %223 = sbr.rel (%p221) target = $region44
        $region43: #{tpu_custom_call.1} parent=31 // pred_region
          %v224 = vld [vmem:[%s190] sm:$0xf]
          %v225 = vld [vmem:[#allocation8] sm:$0xf]
          %v226 = vld [vmem:[#allocation8 + $0x4] sm:$0xf]
          %v227 = vld [vmem:[#allocation8 + $0x8] sm:$0xf]
          %v228 = vld [vmem:[#allocation8 + $0xc] sm:$0xf]
          %v229 = vld [vmem:[%s2] sm:$0x1]
          %v231 = vperm.slane %v229, 0
          %v237 = vunpack.c.l.b16 %v225
          %v238 = vunpack.c.l.b16 %v226
          %v239 = vunpack.c.l.b16 %v227
          %v240 = vunpack.c.l.b16 %v228
          %v241 = vpack.c.b16 %v238, %v237
          %v242 = vpack.c.b16 %v240, %v239
          %vm245 = vcmask 261120
          %v247 = vsel %vm245, %v224, 0
          %249 = vmatpush.bf16.msra.mxu0 0
          %250 = vmatpush.bf16.msra.mxu0 0
          %251 = vmatpush.bf16.msra.mxu0 0
          %252 = vmatpush.bf16.msra.mxu0 0
          %253 = vmatpush.bf16.msra.mxu0 0
          %254 = vmatpush.bf16.msra.mxu0 0
          %255 = vmatpush.bf16.msra.mxu0 %v242
          %256 = vmatpush.bf16.msra.mxu0 %v241
          %257 = vmatmul.bf16.gmra.mxu0 %v247
          %v258 = vpop.f32.mrf.mxu0
          %v259 = vadd.f32 %v231, %v258
          %v260 = vpop.f32.mrf.mxu0
          %261 = vdwg.mxu0
          %v262 = vmul.f32 %v259, 0.25
          %v263 = vpack.c.bf16 %v262, %v262
          %vm264 = vcmask 125952
          %265 = vst.msk [vmem:[#allocation2] sm:$0xf] %vm264, %v263
          %v266 = vpack.c.bf16 %v259, %v259
          %268 = vrot.lane.b32.xlu0 %v266, 112
          %v269 = vpop.permute.xlu0 %268
          %271 = vst.msk [vmem:[#allocation3] sm:$0xf] %vm264, %v269
          %272 = vrot.lane.b32.xlu0 %v266, 96
          %v273 = vpop.permute.xlu0 %272
          %275 = vst.msk [vmem:[#allocation4] sm:$0xf] %vm264, %v273
        $region44: #{tpu_custom_call.1} parent=31 // pred_fallthru
          _
        %s276 = smul.u32 %s26, 8
        %s277 = sshra.s32 %s276, 3
        %s278 = sand.u32 %s276, 7
        %s279 = smul.addr %s277, 4
        %s280 = scalar_lea.vmem [#allocation2], %s279
        %v281 = vld [vmem:[%s280] sm:$0xf]
        %v282 = vld [vmem:[#allocation3] sm:$0xf]
        %v283 = vld [vmem:[#allocation4] sm:$0xf]
        %vm284 = vcmask 130048
        %v286 = vsel %vm284, %v281, 0
        %v289 = vsel %vm284, %v282, 0
        %291 = vmatpush.bf16.xpose.msra.mxu0 0
        %292 = vmatpush.bf16.xpose.msra.mxu0 0
        %293 = vmatpush.bf16.xpose.msra.mxu0 0
        %294 = vmatpush.bf16.xpose.msra.mxu0 0
        %295 = vmatpush.bf16.xpose.msra.mxu0 0
        %296 = vmatpush.bf16.xpose.msra.mxu0 0
        %297 = vmatpush.bf16.xpose.msra.mxu0 0
        %298 = vmatpush.bf16.xpose.msra.mxu0 %v289
        %299 = vmatmul.bf16.gmra.mxu0 %v286
        %v300 = vpop.f32.mrf.mxu0
        %v301 = vadd.f32 0.0, %v300
        %v302 = vpop.f32.mrf.mxu0
        %303 = vdwg.mxu0
        %vm304 = vcmask 64512
        %v305 = vsel %vm304, %v301, -inf
        %306 = vmax.xlane.f32.xlu0 %v305
        %v307 = vpop.xlane.xlu0 %306
        %v308 = vsub.f32 %v301, %v307
        %v309 = vmul.f32 %v308, 1.442695
        %v310 = vpow.pop %v309
        %v311 = vsel %vm304, %v310, 0.0
        %312 = vadd.xlane.f32.xlu0 %v311
        %v313 = vpop.xlane.xlu0 %312
        %v314 = vrcp.pop %v313
        %v315 = vmul.f32 %v310, %v314
        %v316 = vpack.c.bf16 %v315, %v315
        %v318 = vsel %vm304, %v316, 0
        %vm320 = vcmask 1043456
        %v322 = vsel %vm320, %v283, 0
        %324 = vmatpush.bf16.msra.mxu0 0
        %325 = vmatpush.bf16.msra.mxu0 0
        %326 = vmatpush.bf16.msra.mxu0 0
        %327 = vmatpush.bf16.msra.mxu0 0
        %328 = vmatpush.bf16.msra.mxu0 0
        %329 = vmatpush.bf16.msra.mxu0 0
        %330 = vmatpush.bf16.msra.mxu0 0
        %331 = vmatpush.bf16.msra.mxu0 %v322
        %332 = vmatmul.bf16.gmra.mxu0 %v318
        %v333 = vpop.f32.mrf.mxu0
        %v334 = vadd.f32 0.0, %v333
        %v335 = vpop.f32.mrf.mxu0
        %336 = vdwg.mxu0
        %337 = vst.msk [vmem:[%s218] sm:$0xff] %vm284, %v334
        %s338 = sand.u32 %s111, 1
        %s339 = scalar_lea.sflag [#allocation7], %s338
        %s340 = sand.u32 %s111, 1
        %s341 = smul.addr %s340, 8
        %s342 = scalar_lea.vmem [#allocation10], %s341
        // Predicated region
        $region45: #{tpu_custom_call.1} parent=31 // pred_check
          %p343 = pneg %p121
        $region46: #{tpu_custom_call.1} parent=31 // pred_check_branch
          %345 = sbr.rel (%p343) target = $region48
        $region47: #{tpu_custom_call.1} parent=31 // pred_region
          %347 = vsyncadd %s339, 0
          %s348 = sadd.s32 %s26, %s25
          %s349 = smul.addr %s348, 8
          %s350 = scalar_lea.hbm %s3, %s349
          %s352 = sshll.u32 %s342, 4
          %s353 = int_to_ptr.vmem [resolvable:$true] %s352
          %s354 = sshll.u32 %s350, 4
          %s355 = int_to_ptr.hbm [resolvable:$true] %s354
          %357 = dma.vmem_to_hbm [thread:$0]  %s353, 128, %s355, %s339
        $region48: #{tpu_custom_call.1} parent=31 // pred_fallthru
          _
      $region32: #{tpu_custom_call.1} parent=5 // pred_fallthru
        _
      %p358 = scmp.le.s32.totalorder 2, %s16
      // Predicated region
      $region49: #{tpu_custom_call.1} parent=5 // pred_check
        %p359 = pneg %p358
      $region50: #{tpu_custom_call.1} parent=5 // pred_check_branch
        %361 = sbr.rel (%p359) target = $region52
      $region51: #{tpu_custom_call.1} parent=5 // pred_region
        %s362 = ssub.s32 %s16, 2
        // Predicated region
        $region53: #{tpu_custom_call.1} parent=51 // pred_check
          %p363 = pneg %p127
        $region54: #{tpu_custom_call.1} parent=51 // pred_check_branch
          %365 = sbr.rel (%p363) target = $region56
        $region55: #{tpu_custom_call.1} parent=51 // pred_region
          %s366 = sand.u32 %s112, 1
          %s367 = scalar_lea.sflag [#allocation7], %s366
          %s368 = sand.u32 %s112, 1
          %s369 = smul.addr %s368, 8
          %s370 = scalar_lea.vmem [#allocation10], %s369
          %372 = dma.done %s367, 128
        $region56: #{tpu_custom_call.1} parent=51 // pred_fallthru
          _
      $region52: #{tpu_custom_call.1} parent=5 // pred_fallthru
        _
    $region6: #{tpu_custom_call.1} parent=1 // loop_footer
      %s20 = sadd.s32 1, %s16
    $region7: #{tpu_custom_call.1} parent=1 // loop_footer_branch
      %15 = sbr.rel target = $region3
    $region8: #{tpu_custom_call.1} parent=1 // loop_exit
      _
    %373 = vsyncpa [#allocation6], 1
    %s374 = scalar_lea.sflag [#allocation6], 1
    %375 = vsyncpa %s374, 1
    %376 = vsyncpa [#allocation9], 1
    %377 = vsyncpa [#allocation7], 1
    %s378 = scalar_lea.sflag [#allocation7], 1
    %379 = vsyncpa %s378, 1

</llo_original>
